<compile_context>
chip_gen: v6e
topology: v6e:2x2x1
jax: 0.10.0
libtpu: 0.0.40
codegen_flags: <defaults>
</compile_context>

<pallas_src>
import jax
import jax.numpy as jnp
from jax.experimental import pallas as pl
from jax.experimental.pallas import tpu as pltpu

NO_DIV_BY_ZERO = 1e-9
_TARGET_BLOCK_BYTES = 4 << 20      # ~4 MiB blocks: ~86% of HBM roofline, amortizes grid-step overhead
_FALLBACK_VMEM_CAPACITY = 64 << 20  # assume the smallest (v7x) if the query fails


def _snake_kernel(x_ref, a_ref, o_ref):
    # x_ref: (tR, tT) tile; a_ref: (tR, 1) per-row alpha (f32, exp already applied).
    x = x_ref[...].astype(jnp.float32)
    a = a_ref[...]                             # (tR, 1) -> broadcasts over lanes
    inv_a = 1.0 / (a + NO_DIV_BY_ZERO)         # tiny (tR,1) exact divide, stays within 1e-5 tol
    s = jnp.sin(x * a)
    o_ref[...] = (x + inv_a * (s * s)).astype(o_ref.dtype)


def _vmem_capacity_bytes() -> int:
    try:
        return int(pltpu.get_tpu_info().vmem_capacity_bytes)
    except Exception:
        return _FALLBACK_VMEM_CAPACITY


def _pick_tiles(rows: int, t: int, itemsize: int, max_block_bytes: int):
    # Sublane packing for the dtype: 8 (f32), 16 (bf16/f16), 32 (int8/fp8).
    r_pack = max(8, 32 // max(1, itemsize))

    # Widen the lane extent first: full T if it fits with one sublane-pack of
    # rows, otherwise the largest 128-multiple within the per-row budget.
    per_row_budget = max(1, max_block_bytes // r_pack)
    if t * itemsize <= per_row_budget:
        t_tile = t
    else:
        t_tile = max(128, (per_row_budget // (128 * itemsize)) * 128)
        t_tile = min(t_tile, t)

    # Then grow rows to fill the block budget, rounded to the sublane pack
    # (or full extent, which always satisfies the (8,128) constraint).
    max_rows = max(1, max_block_bytes // (t_tile * itemsize))
    if rows <= max_rows:
        r_tile = rows
    else:
        r_tile = max(r_pack, (max_rows // r_pack) * r_pack)

    # v7x megacore: if the whole array fits in one block but is splittable,
    # halve the row tile so the grid has >= 2 steps and both TCs get work.
    if r_tile == rows and t_tile == t and rows >= 2 * r_pack:
        r_tile = max(r_pack, ((rows // 2) // r_pack) * r_pack)

    return r_tile, t_tile


def snake(x: jax.Array, alpha: jax.Array, *, alpha_logscale: bool = False) -> jax.Array:
    """Snake activation. x: (B, C, T); alpha: (C,)."""
    B, C, T = x.shape
    R = B * C
    x2d = x.reshape(R, T)

    # Hoist per-channel exp (logscale) out of the kernel; keep params in f32.
    a = alpha.astype(jnp.float32)
    if alpha_logscale:
        a = jnp.exp(a)
    a_rows = jnp.tile(a, B).reshape(R, 1)       # row b*C + c gets alpha[c]

    itemsize = x.dtype.itemsize
    vmem_cap = _vmem_capacity_bytes()
    # Keep the 4-buffer working set (double-buffered in + out) <= half of VMEM.
    max_block_bytes = max(128 * 8 * itemsize, min(_TARGET_BLOCK_BYTES, vmem_cap // 8))
    tR, tT = _pick_tiles(R, T, itemsize, max_block_bytes)
    grid = (pl.cdiv(R, tR), pl.cdiv(T, tT))

    block_bytes = tR * tT * itemsize
    # Cover 4x block + alpha buffers + headroom; also lifts the v5e 16 MiB default.
    vmem_limit = int(min(vmem_cap, max(32 << 20, 8 * block_bytes)))

    out2d = pl.pallas_call(
        _snake_kernel,
        out_shape=jax.ShapeDtypeStruct((R, T), x.dtype),
        grid_spec=pltpu.PrefetchScalarGridSpec(
            num_scalar_prefetch=0,
            grid=grid,
            in_specs=[
                pl.BlockSpec((tR, tT), lambda r, t: (r, t)),
                pl.BlockSpec((tR, 1), lambda r, t: (r, 0)),
            ],
            out_specs=pl.BlockSpec((tR, tT), lambda r, t: (r, t)),
        ),
        compiler_params=pltpu.CompilerParams(
            dimension_semantics=("parallel", "parallel"),
            vmem_limit_bytes=vmem_limit,
        ),
    )(x2d, a_rows)
    return out2d.reshape(B, C, T)


def snake_reference(x, alpha, *, alpha_logscale=False):
    a = alpha[None, :, None].astype(jnp.float32)
    if alpha_logscale:
        a = jnp.exp(a)
    xf = x.astype(jnp.float32)
    y = xf + 1.0 / (a + NO_DIV_BY_ZERO) * jnp.sin(xf * a) ** 2
    return y.astype(x.dtype)


def _check(x, alpha, *, alpha_logscale, atol, rtol, tag):
    out = snake(x, alpha, alpha_logscale=alpha_logscale)
    jax.block_until_ready(out)
    ref = snake_reference(x, alpha, alpha_logscale=alpha_logscale)
    assert out.shape == x.shape and out.dtype == x.dtype, f"shape/dtype mismatch ({tag})"
    ok = jnp.allclose(out.astype(jnp.float32), ref.astype(jnp.float32), atol=atol, rtol=rtol)
    assert ok, f"value mismatch ({tag})"


if __name__ == "__main__":
    key = jax.random.PRNGKey(0)

    # Case 1: module default (alpha_logscale=False -> alpha = ones(C)), small f32.
    B, C, T = 2, 4, 16
    k1, k2, k3, k4 = jax.random.split(key, 4)
    x = jax.random.normal(k1, (B, C, T), dtype=jnp.float32)
    alpha = jnp.ones((C,), dtype=jnp.float32)
    _check(x, alpha, alpha_logscale=False, atol=1e-5, rtol=1e-5, tag="f32 linear alpha")

    # Case 2: alpha_logscale=True init (alpha = zeros(C)).
    alpha_log = jnp.zeros((C,), dtype=jnp.float32)
    _check(x, alpha_log, alpha_logscale=True, atol=1e-5, rtol=1e-5, tag="f32 logscale alpha")

    # Case 3: ragged shapes (R not multiple of 8, T not multiple of 128), random alpha.
    B2, C2, T2 = 3, 5, 200
    x2 = jax.random.normal(k2, (B2, C2, T2), dtype=jnp.float32)
    alpha2 = jax.random.normal(k3, (C2,), dtype=jnp.float32) * 0.1 + 1.0
    _check(x2, alpha2, alpha_logscale=False, atol=1e-5, rtol=1e-5, tag="f32 ragged")

    # Case 4: multi-block grid (row split) + bf16 in/out with f32 in-kernel math.
    B3, C3, T3 = 4, 8, 300
    x3 = jax.random.normal(k4, (B3, C3, T3), dtype=jnp.bfloat16)
    alpha3 = jnp.ones((C3,), dtype=jnp.float32) * 0.5
    _check(x3, alpha3, alpha_logscale=False, atol=2e-2, rtol=2e-2, tag="bf16 multi-block")

    print("KERNEL_OK")
</pallas_src>

<mosaic_0001>
module attributes {stable_mosaic.version = 11 : i64} {
  func.func @_snake_kernel(%arg0: i32, %arg1: i32, %arg2: memref<8x16xf32, #tpu.memory_space<vmem>>, %arg3: memref<8x1xf32, #tpu.memory_space<vmem>>, %arg4: memref<8x16xf32, #tpu.memory_space<vmem>>) attributes {dimension_semantics = [#tpu.dimension_semantics<parallel>, #tpu.dimension_semantics<parallel>], iteration_bounds = array<i64: 1, 1>, scalar_prefetch = 0 : i64, scratch_operands = 0 : i64, tpu.core_type = #tpu.core_type<tc>, window_params = [{transform_indices = @transform_0, window_bounds = array<i64: 8, 16>}, {transform_indices = @transform_1, window_bounds = array<i64: 8, 1>}, {transform_indices = @transform_2, window_bounds = array<i64: 8, 16>}]} {
    %c0 = arith.constant 0 : index
    %c0_0 = arith.constant 0 : index
    %0 = vector.load %arg2[%c0, %c0_0] : memref<8x16xf32, #tpu.memory_space<vmem>>, vector<8x16xf32>
    %c0_1 = arith.constant 0 : index
    %c0_2 = arith.constant 0 : index
    %1 = vector.load %arg3[%c0_1, %c0_2] : memref<8x1xf32, #tpu.memory_space<vmem>>, vector<8x1xf32>
    %cst = arith.constant 9.99999971E-10 : f32
    %2 = vector.broadcast %cst : f32 to vector<8x1xf32>
    %3 = arith.addf %1, %2 : vector<8x1xf32>
    %cst_3 = arith.constant 1.000000e+00 : f32
    %4 = vector.broadcast %cst_3 : f32 to vector<8x1xf32>
    %5 = arith.divf %4, %3 : vector<8x1xf32>
    %6 = vector.broadcast %1 : vector<8x1xf32> to vector<8x16xf32>
    %7 = arith.mulf %0, %6 : vector<8x16xf32>
    %8 = math.sin %7 : vector<8x16xf32>
    %9 = arith.mulf %8, %8 : vector<8x16xf32>
    %10 = vector.broadcast %5 : vector<8x1xf32> to vector<8x16xf32>
    %11 = arith.mulf %10, %9 : vector<8x16xf32>
    %12 = arith.addf %0, %11 : vector<8x16xf32>
    %c0_4 = arith.constant 0 : index
    %c0_5 = arith.constant 0 : index
    %13 = vector.load %arg4[%c0_4, %c0_5] : memref<8x16xf32, #tpu.memory_space<vmem>>, vector<8x16xf32>
    tpu.vector_store %arg4[%c0_4, %c0_5], %12 {strides = array<i32>} : memref<8x16xf32, #tpu.memory_space<vmem>>, vector<8x16xf32>,
    return
  }
  func.func @transform_0(%arg0: i32, %arg1: i32) -> (i32, i32) {
    %c0_i32 = arith.constant 0 : i32
    return %arg0, %arg1 : i32, i32
  }
  func.func @transform_1(%arg0: i32, %arg1: i32) -> (i32, i32) {
    %c0_i32 = arith.constant 0 : i32
    %c0_i32_0 = arith.constant 0 : i32
    return %arg0, %c0_i32 : i32, i32
  }
  func.func @transform_2(%arg0: i32, %arg1: i32) -> (i32, i32) {
    %c0_i32 = arith.constant 0 : i32
    return %arg0, %arg1 : i32, i32
  }
}

</mosaic_0001>

<llo_original>
// kernel: tpu_custom_call.1
$region0: #{tpu_custom_call.1}
  #allocation0 [shape = 'u32[]', space=smem, size = 0x4, offset = 0x4, fixed_abs, tag = 'smem constant byte address 0x4 - core index']
  #allocation1 [shape = 'u32[144,128]{1,0:T(1,128)}', space=vmem, size = 0x12000, scoped, tag = 'internal scratch']
  %s0 = inlined_call_operand.vmem [shape: f32[8,16], index: 0, kind: input, shape index: {}]
  %s1 = inlined_call_operand.vmem [shape: f32[8,1], index: 1, kind: input, shape index: {}]
  %s2 = inlined_call_operand.hbm [shape: f32[8,16], index: 2, kind: output, shape index: {}]
  %s3 = sld [smem:[#allocation0]]
  $region18: #{tpu_custom_call.1} parent=0
    _
  %s5 = ssub.s32 1, %s3
  %s6 = scalar_select 0, %s5, %s3
  $region1: #{tpu_custom_call.1} parent=0
    #allocation2 [shape = 'u8[4096]{0}', space=vmem, size = 0x1000, scoped, tag = 'output window, operand 0, single buffered']
    #allocation3 [shape = 's32[1]{0}', space=sflag, size = 0x4, scoped, tag = 'scoped memory for tpu_custom_call.1']
    %7 = vsyncpa [#allocation3], 0
    // Predicated region
    $region2: #{tpu_custom_call.1} parent=1 // pred_check
      _
    $region3: #{tpu_custom_call.1} parent=1 // pred_check_branch
      %9 = sbr.rel (0) target = $region5
    $region4: #{tpu_custom_call.1} parent=1 // pred_region
      _
    $region5: #{tpu_custom_call.1} parent=1 // pred_fallthru
      _
    // Predicated region
    $region6: #{tpu_custom_call.1} parent=1 // pred_check
      _
    $region7: #{tpu_custom_call.1} parent=1 // pred_check_branch
      %11 = sbr.rel (0) target = $region9
    $region8: #{tpu_custom_call.1} parent=1 // pred_region
      _
    $region9: #{tpu_custom_call.1} parent=1 // pred_fallthru
      _
    %v12 = vld [vmem:[%s0] sm:$0xff]
    %v13 = vld [vmem:[%s1] sm:$0xff]
    %v14 = vadd.f32 %v13, 1e-09
    %v15 = vrcp.pop %v14
    %v16 = vmul.f32 1.0, %v15
    %18 = vset.pattern.permute.xlu0 0
    %19 = vperm.xlu0 %18, %v13
    %v20 = vpop.permute.xlu0 %19
    %v22 = vmul.f32 %v12, %v20
    %v23 = vand.u32 2147483647, %v22
    %vm24 = vcmp.le.f32.partialorder %v23, 0.7853982
    %vm25 = vcmp.lt.s32.totalorder %v22, 0
    %v26 = vand.u32 %v22, 2139095040
    %v27 = vshrl.u32 %v26, 23
    %v28 = vsub.s32 %v27, 127
    %v29 = vand.u32 2147483647, %v22
    %v30 = vand.u32 %v29, 8388607
    %v31 = vor.u32 %v30, 8388608
    %v32 = vsub.s32 0, %v31
    %v33 = vadd.s32 %v28, 1
    %vm34 = vcmp.gt.s32.totalorder %v33, 0
    %v35 = vsel %vm34, %v33, 0
    %v36 = vshrl.u32 %v35, 5
    %v37 = vand.u32 %v35, 31
    %v38 = vsub.s32 32, %v37
    %v39 = vshrl.u32 683565275, %v38
    %v40 = vshll.u32 683565275, %v37
    %v41 = vshrl.u32 2475754826, %v38
    %v42 = vor.u32 %v40, %v41
    %v43 = vshll.u32 2475754826, %v37
    %v44 = vshrl.u32 2131351028, %v38
    %v45 = vor.u32 %v43, %v44
    %v46 = vshll.u32 2131351028, %v37
    %v47 = vshrl.u32 2102212464, %v38
    %v48 = vor.u32 %v46, %v47
    %v49 = vshll.u32 2102212464, %v37
    %v50 = vshrl.u32 920167782, %v38
    %v51 = vor.u32 %v49, %v50
    %v52 = vshll.u32 920167782, %v37
    %v53 = vshrl.u32 1326507024, %v38
    %v54 = vor.u32 %v52, %v53
    %vm55 = vcmp.lt.s32.totalorder %v36, 1
    %vm56 = vcmp.lt.s32.totalorder %v36, 2
    %vm57 = vcmp.lt.s32.totalorder %v36, 3
    %vm58 = vcmp.lt.s32.totalorder %v36, 4
    %v59 = vsel %vm55, %v39, %v42
    %v60 = vsel %vm58, %v48, 2102212464
    %v61 = vsel %vm57, %v45, %v60
    %v62 = vsel %vm56, %v59, %v61
    %v63 = vsel %vm55, %v42, %v45
    %v64 = vsel %vm58, %v51, 920167782
    %v65 = vsel %vm57, %v48, %v64
    %v66 = vsel %vm56, %v63, %v65
    %v67 = vsel %vm55, %v45, %v48
    %v68 = vsel %vm58, %v54, 1326507024
    %v69 = vsel %vm57, %v51, %v68
    %v70 = vsel %vm56, %v67, %v69
    %v71 = vshll.u32 %v31, 8
    %v72 = vmul.u32.u64.compose %v71, %v70
    %v73 = vextract.low.u32 %v72
    %v74 = vextract.high.u32 %v72
    %v75 = vmul.u32.u64.compose %v71, %v66
    %v76 = vextract.low.u32 %v75
    %v77 = vextract.high.u32 %v75
    %v78 = vmul.u32 %v71, %v62
    %v79 = vadd.s32 %v74, %v76
    %vm80 = vc.u32 %v74, %v76
    %v81 = vadd.s32 %v77, 1
    %v82 = vsel %vm80, %v81, %v77
    %v83 = vadd.s32 %v78, %v82
    %v84 = vadd.s32 %v83, 536870912
    %v85 = vshrl.u32 %v84, 30
    %v86 = vshll.u32 %v85, 30
    %v87 = vsub.s32 %v83, %v86
    %vm88 = vcmp.lt.s32.totalorder %v87, 0
    %v89 = vsub.s32 0, %v87
    %v90 = vsel %vm88, %v89, %v87
    %v91 = vclz %v90
    %v92 = vsub.s32 %v91, 2
    %vm93 = vcmp.gt.s32.totalorder 0, %v92
    %v94 = vsel %vm93, 0, %v92
    %v95 = vsub.s32 32, %v94
    %v96 = vshll.u32 %v87, %v94
    %v97 = vshrl.u32 %v79, %v95
    %v98 = vor.u32 %v96, %v97
    %v99 = vsub.s32 4294967266, %v94
    %v100 = vadd.s32 %v99, 127
    %v101 = vshll.u32 %v100, 23
    %v102 = vor.u32 4788187, %v101
    %v103 = vand.u32 2147483647, %v102
    %v105 = vcvt.s32.f32 %v98
    %v106 = vmul.f32 %v105, %v103
    %v107 = vxor.u32 %v106, 2147483648
    %v108 = vsel %vm25, %v107, %v106
    %v109 = vsub.s32 4, %v85
    %v110 = vsel %vm25, %v109, %v85
    %v111 = vsel %vm24, %v22, %v108
    %v112 = vsel %vm24, 0, %v110
    %v113 = vcosq.f32.pop %v111
    %v114 = vsinq.f32.pop %v111
    %vm115 = vweird.f32 %v22
    %v116 = vadd.s32 %v112, 3
    %v117 = vand.u32 %v116, 3
    %vm118 = vcmp.lt.s32.totalorder %v117, 2
    %vm119 = vcmp.eq.s32.totalorder %v117, 0
    %v120 = vxor.u32 %v114, 2147483648
    %v121 = vsel %vm119, %v113, %v120
    %vm122 = vcmp.eq.s32.totalorder %v117, 2
    %v123 = vxor.u32 %v113, 2147483648
    %v124 = vsel %vm122, %v123, %v114
    %v125 = vsel %vm118, %v121, %v124
    %v126 = vsel %vm115, nan, %v125
    %v127 = vmul.f32 %v126, %v126
    %129 = vset.pattern.permute.xlu0 0
    %130 = vperm.xlu0 %129, %v16
    %v131 = vpop.permute.xlu0 %130
    %v133 = vmul.f32 %v131, %v127
    %v134 = vadd.f32 %v12, %v133
    %vm135 = vcmask 130048
    %136 = vst.msk [vmem:[#allocation2] sm:$0xff] %vm135, %v134
    // Predicated region
    $region10: #{tpu_custom_call.1} parent=1 // pred_check
      _
    $region11: #{tpu_custom_call.1} parent=1 // pred_check_branch
      %138 = sbr.rel (0) target = $region13
    $region12: #{tpu_custom_call.1} parent=1 // pred_region
      %s140 = ssub.s32 128, 128
      %141 = vsyncadd [#allocation3], %s140
      %s143 = sshll.u32 [#allocation2], 4
      %s144 = int_to_ptr.vmem [resolvable:$true] %s143
      %146 = dma.vmem_to_hbm [thread:$0]  %s144, 128, %s2, [#allocation3]
    $region13: #{tpu_custom_call.1} parent=1 // pred_fallthru
      _
    // Predicated region
    $region14: #{tpu_custom_call.1} parent=1 // pred_check
      _
    $region15: #{tpu_custom_call.1} parent=1 // pred_check_branch
      %148 = sbr.rel (0) target = $region17
    $region16: #{tpu_custom_call.1} parent=1 // pred_region
      %149 = dma.done [#allocation3], 128
    $region17: #{tpu_custom_call.1} parent=1 // pred_fallthru
      _
    %150 = vsyncpa [#allocation3], 1

</llo_original>
